<compile_context>
chip_gen: v5e
topology: v5e:2x2
jax: 0.10.0
libtpu: 0.0.40
codegen_flags: <defaults>
</compile_context>

<pallas_src>
import functools

import jax
import jax.numpy as jnp
from jax import lax
from jax.experimental import pallas as pl
from jax.experimental.pallas import tpu as pltpu

_LANE = 128
_SUBLANE = 8
# Target for the double-buffered working set: safe on v7x (64 MiB VMEM/TC),
# generous headroom on v5e/v6e (128 MiB).
_VMEM_BUDGET = 40 * 1024 * 1024
_VMEM_LIMIT_CAP = 48 * 1024 * 1024


def _round_up(x, m):
    return ((x + m - 1) // m) * m


def _fit(dim, cap, unit):
    """Tile extent: the full dim if it fits under `cap` (full-dim blocks are
    always legal), else the largest multiple of `unit` that does."""
    if dim <= cap:
        return dim
    return max(unit, (cap // unit) * unit)


def _working_set_bytes(tm, tn, tk, in_itemsize, out_itemsize):
    return (
        2 * (tm * tk + tn * tk) * in_itemsize   # x / weight streams, double-buffered
        + 2 * tm * tn * out_itemsize            # output tile, double-buffered
        + tm * tn * 4                           # f32 accumulator scratch
        + 2 * tn * 4                            # bias row
    )


def _pick_tiles(M, N, K, in_itemsize, out_itemsize):
    if M <= 64:
        # GEMV-like regime (inference batches): take the whole reduction in one
        # block when possible and use long lane-dense N tiles (long weight DMAs,
        # unmasked stores).  Kills the K grid axis and the accumulator RMW.
        tm = M
        tn_cap = 2048
        tk_cap = K
    else:
        tm = _fit(M, 512, _SUBLANE)
        tn_cap = 512
        tk_cap = 2048 if in_itemsize <= 2 else 1024
    tn = _fit(N, tn_cap, _LANE)
    tk = _fit(K, tk_cap, _LANE)
    # Shrink K tile (then N tile) until the double-buffered working set fits
    # the budget, preserving 2-deep pipelining on v7x's 64 MiB VMEM.
    while _working_set_bytes(tm, tn, tk, in_itemsize, out_itemsize) > _VMEM_BUDGET and tk > _LANE:
        tk = max(_LANE, _round_up(tk // 2, _LANE))
    while _working_set_bytes(tm, tn, tk, in_itemsize, out_itemsize) > _VMEM_BUDGET and tn > _LANE:
        tn = max(_LANE, _round_up(tn // 2, _LANE))
    return tm, tn, tk


def _wslinear_kernel(x_ref, w_ref, b_ref, o_ref, *scratch, scale, n_k):
    # x_ref : VMEM (tm, tk)  input tile
    # w_ref : VMEM (tn, tk)  weight tile, kept (out, in) — transposed on-chip
    # b_ref : VMEM (1, tn)   f32 bias row
    # o_ref : VMEM (tm, tn)  output tile
    # scratch: (acc_ref,) f32 accumulator only when the K axis has >1 step.
    prod = lax.dot_general(
        x_ref[...], w_ref[...],
        dimension_numbers=(((1,), (1,)), ((), ())),   # contract last dims (x @ W^T)
        preferred_element_type=jnp.float32,
    )

    if n_k == 1:
        # Whole reduction in a single block: no accumulator round-trip at all.
        o_ref[...] = (prod * scale + b_ref[...]).astype(o_ref.dtype)
        return

    acc_ref = scratch[0]
    k = pl.program_id(2)

    @pl.when(k == 0)
    def _():
        acc_ref[...] = prod          # direct assign — no zero-fill store pass

    @pl.when(k > 0)
    def _():
        acc_ref[...] += prod

    @pl.when(k == n_k - 1)
    def _():
        # Fold scale into the epilogue: s * (x @ W^T) == (s*x) @ W^T.
        o_ref[...] = (acc_ref[...] * scale + b_ref[...]).astype(o_ref.dtype)


def wslinear(x, weight, bias, *, mxu_dtype=None, tm=None, tn=None, tk=None):
    """x: (..., in_features); weight: (out, in); bias: (out,).

    mxu_dtype: optional compute dtype (e.g. jnp.bfloat16) for x/weight on the
    MXU; accumulation and bias stay f32 and the output keeps x's dtype.
    """
    in_features = x.shape[-1]
    out_features = weight.shape[0]
    assert weight.shape[1] == in_features
    scale = float((2.0 / in_features) ** 0.5)

    out_dtype = x.dtype
    lead = x.shape[:-1]
    x2 = x.reshape(-1, in_features)
    if mxu_dtype is not None:
        x2 = x2.astype(mxu_dtype)
        weight = weight.astype(mxu_dtype)
    elif weight.dtype != x2.dtype:
        weight = weight.astype(x2.dtype)

    M, K = x2.shape
    N = out_features
    in_itemsize = jnp.dtype(x2.dtype).itemsize
    out_itemsize = jnp.dtype(out_dtype).itemsize

    atm, atn, atk = _pick_tiles(M, N, K, in_itemsize, out_itemsize)
    tm = tm or atm
    tn = tn or atn
    tk = tk or atk

    # Only the reduction axis ever needs padding (zeros add nothing to the dot);
    # M/N boundary blocks are masked by Pallas, so no wrapper pad / output slice.
    Kp = _round_up(K, tk)
    if Kp != K:
        x2 = jnp.pad(x2, ((0, 0), (0, Kp - K)))
        weight = jnp.pad(weight, ((0, 0), (0, Kp - K)))

    b2 = bias.astype(jnp.float32).reshape(1, N)   # keep bias f32 end-to-end

    grid = (pl.cdiv(M, tm), pl.cdiv(N, tn), Kp // tk)
    n_k = grid[2]
    scratch = [pltpu.VMEM((tm, tn), jnp.float32)] if n_k > 1 else []

    est = _working_set_bytes(tm, tn, tk, in_itemsize, out_itemsize)
    vmem_limit = int(min(_VMEM_LIMIT_CAP, max(32 * 1024 * 1024, 2 * est)))

    out = pl.pallas_call(
        functools.partial(_wslinear_kernel, scale=scale, n_k=n_k),
        out_shape=jax.ShapeDtypeStruct((M, N), out_dtype),
        grid_spec=pltpu.PrefetchScalarGridSpec(
            num_scalar_prefetch=0,
            grid=grid,
            in_specs=[
                pl.BlockSpec((tm, tk), lambda i, j, k: (i, k)),   # x tile
                pl.BlockSpec((tn, tk), lambda i, j, k: (j, k)),   # weight tile (N, K)
                pl.BlockSpec((1, tn), lambda i, j, k: (0, j)),    # f32 bias row
            ],
            out_specs=pl.BlockSpec((tm, tn), lambda i, j, k: (i, j)),
            scratch_shapes=scratch,
        ),
        compiler_params=pltpu.CompilerParams(
            dimension_semantics=("parallel", "parallel", "arbitrary"),
            vmem_limit_bytes=vmem_limit,
        ),
    )(x2, weight, b2)

    return out.reshape(*lead, N)


if __name__ == "__main__":
    key = jax.random.PRNGKey(0)
    kx, kw, kb, kx2, kw2, kb2 = jax.random.split(key, 6)

    # ---- Test 1: module-sized shapes, default f32 path (exact semantics) ----
    batch, in_features, out_features = 2, 32, 64
    x = jax.random.normal(kx, (batch, in_features), dtype=jnp.float32)
    weight = jax.random.normal(kw, (out_features, in_features), dtype=jnp.float32)
    # bias is zero-initialized in the module; use a nonzero one to exercise the add.
    bias = jax.random.normal(kb, (out_features,), dtype=jnp.float32)

    out = jax.block_until_ready(wslinear(x, weight, bias))
    scale = (2.0 / in_features) ** 0.5
    ref = (x * scale) @ weight.T + bias
    assert out.shape == (batch, out_features)
    assert out.dtype == x.dtype
    assert jnp.allclose(out, ref, atol=1e-4, rtol=1e-4), "f32 fast-path mismatch"

    # ---- Test 2: forced small tiles -> multi-block grid, K padding, masked
    # boundary blocks on N, accumulator path (no wrapper M/N padding). --------
    M2, K2, N2 = 16, 320, 200
    x2 = jax.random.normal(kx2, (M2, K2), dtype=jnp.float32)
    w2 = jax.random.normal(kw2, (N2, K2), dtype=jnp.float32)
    b2 = jax.random.normal(kb2, (N2,), dtype=jnp.float32)
    out2 = jax.block_until_ready(wslinear(x2, w2, b2, tm=8, tn=128, tk=128))
    ref2 = (x2 * (2.0 / K2) ** 0.5) @ w2.T + b2
    assert out2.shape == (M2, N2)
    assert jnp.allclose(out2, ref2, atol=5e-3, rtol=5e-3), "tiled/accum path mismatch"

    # ---- Test 3: bf16 MXU operands with f32 accumulation / f32 bias ---------
    out3 = jax.block_until_ready(wslinear(x2, w2, b2, mxu_dtype=jnp.bfloat16))
    assert out3.dtype == x2.dtype
    assert jnp.allclose(out3, ref2, atol=1e-1, rtol=5e-2), "bf16 path mismatch"

    print("KERNEL_OK")
</pallas_src>

<mosaic_0001>
module attributes {stable_mosaic.version = 11 : i64} {
  func.func @_wslinear_kernel(%arg0: i32, %arg1: i32, %arg2: i32, %arg3: memref<2x32xf32, #tpu.memory_space<vmem>>, %arg4: memref<64x32xf32, #tpu.memory_space<vmem>>, %arg5: memref<1x64xf32, #tpu.memory_space<vmem>>, %arg6: memref<2x64xf32, #tpu.memory_space<vmem>>) attributes {dimension_semantics = [#tpu.dimension_semantics<parallel>, #tpu.dimension_semantics<parallel>, #tpu.dimension_semantics<arbitrary>], iteration_bounds = array<i64: 1, 1, 1>, scalar_prefetch = 0 : i64, scratch_operands = 0 : i64, tpu.core_type = #tpu.core_type<tc>, window_params = [{transform_indices = @transform_0, window_bounds = array<i64: 2, 32>}, {transform_indices = @transform_1, window_bounds = array<i64: 64, 32>}, {transform_indices = @transform_2, window_bounds = array<i64: 1, 64>}, {transform_indices = @transform_3, window_bounds = array<i64: 2, 64>}]} {
    %c0 = arith.constant 0 : index
    %c0_0 = arith.constant 0 : index
    %0 = vector.load %arg3[%c0, %c0_0] : memref<2x32xf32, #tpu.memory_space<vmem>>, vector<2x32xf32>
    %c0_1 = arith.constant 0 : index
    %c0_2 = arith.constant 0 : index
    %1 = vector.load %arg4[%c0_1, %c0_2] : memref<64x32xf32, #tpu.memory_space<vmem>>, vector<64x32xf32>
    %cst = arith.constant dense<0.000000e+00> : vector<2x64xf32>
    %2 = tpu.matmul %0, %1, %cst {dimension_numbers = #tpu.dot_dimension_numbers<[1], [1], [0], [0], [0, 0, 1, 0], [], []>} : vector<2x32xf32>, vector<64x32xf32>, vector<2x64xf32> -> vector<2x64xf32>
    %cst_3 = arith.constant 2.500000e-01 : f32
    %3 = vector.broadcast %cst_3 : f32 to vector<2x64xf32>
    %4 = arith.mulf %2, %3 : vector<2x64xf32>
    %c0_4 = arith.constant 0 : index
    %c0_5 = arith.constant 0 : index
    %5 = vector.load %arg5[%c0_4, %c0_5] : memref<1x64xf32, #tpu.memory_space<vmem>>, vector<1x64xf32>
    %6 = vector.broadcast %5 : vector<1x64xf32> to vector<2x64xf32>
    %7 = arith.addf %4, %6 : vector<2x64xf32>
    %c0_6 = arith.constant 0 : index
    %c0_7 = arith.constant 0 : index
    %8 = vector.load %arg6[%c0_6, %c0_7] : memref<2x64xf32, #tpu.memory_space<vmem>>, vector<2x64xf32>
    tpu.vector_store %arg6[%c0_6, %c0_7], %7 {strides = array<i32>} : memref<2x64xf32, #tpu.memory_space<vmem>>, vector<2x64xf32>,
    return
  }
  func.func @transform_0(%arg0: i32, %arg1: i32, %arg2: i32) -> (i32, i32) {
    %c0_i32 = arith.constant 0 : i32
    return %arg0, %arg2 : i32, i32
  }
  func.func @transform_1(%arg0: i32, %arg1: i32, %arg2: i32) -> (i32, i32) {
    %c0_i32 = arith.constant 0 : i32
    return %arg1, %arg2 : i32, i32
  }
  func.func @transform_2(%arg0: i32, %arg1: i32, %arg2: i32) -> (i32, i32) {
    %c0_i32 = arith.constant 0 : i32
    %c0_i32_0 = arith.constant 0 : i32
    return %c0_i32, %arg1 : i32, i32
  }
  func.func @transform_3(%arg0: i32, %arg1: i32, %arg2: i32) -> (i32, i32) {
    %c0_i32 = arith.constant 0 : i32
    return %arg0, %arg1 : i32, i32
  }
}

</mosaic_0001>

<llo_original>
// kernel: tpu_custom_call.1
$region0: #{tpu_custom_call.1}
  #allocation0 [shape = 'u32[]', space=smem, size = 0x4, offset = 0x4, fixed_abs, tag = 'smem constant byte address 0x4 - core index']
  #allocation1 [shape = 'u32[72,128]{1,0:T(1,128)}', space=vmem, size = 0x9000, scoped, tag = 'internal scratch']
  %s0 = inlined_call_operand.vmem [shape: f32[2,32], index: 0, kind: input, shape index: {}]
  %s1 = inlined_call_operand.vmem [shape: f32[64,32], index: 1, kind: input, shape index: {}]
  %s2 = inlined_call_operand.vmem [shape: f32[1,64], index: 2, kind: input, shape index: {}]
  %s3 = inlined_call_operand.hbm [shape: f32[2,64], index: 3, kind: output, shape index: {}]
  %s4 = sld [smem:[#allocation0]]
  $region22: #{tpu_custom_call.1} parent=0
    _
  %s6 = ssub.s32 1, %s4
  %s7 = scalar_select 0, %s6, %s4
  $region1: #{tpu_custom_call.1} parent=0
    #allocation2 [shape = 'u8[1024]{0}', space=vmem, size = 0x400, scoped, tag = 'output window, operand 0, single buffered']
    #allocation3 [shape = 's32[1]{0}', space=sflag, size = 0x4, scoped, tag = 'scoped memory for tpu_custom_call.1']
    %8 = vsyncpa [#allocation3], 0
    // Predicated region
    $region2: #{tpu_custom_call.1} parent=1 // pred_check
      _
    $region3: #{tpu_custom_call.1} parent=1 // pred_check_branch
      %10 = sbr.rel (0) target = $region5
    $region4: #{tpu_custom_call.1} parent=1 // pred_region
      _
    $region5: #{tpu_custom_call.1} parent=1 // pred_fallthru
      _
    // Predicated region
    $region6: #{tpu_custom_call.1} parent=1 // pred_check
      _
    $region7: #{tpu_custom_call.1} parent=1 // pred_check_branch
      %12 = sbr.rel (0) target = $region9
    $region8: #{tpu_custom_call.1} parent=1 // pred_region
      _
    $region9: #{tpu_custom_call.1} parent=1 // pred_fallthru
      _
    // Predicated region
    $region10: #{tpu_custom_call.1} parent=1 // pred_check
      _
    $region11: #{tpu_custom_call.1} parent=1 // pred_check_branch
      %14 = sbr.rel (0) target = $region13
    $region12: #{tpu_custom_call.1} parent=1 // pred_region
      _
    $region13: #{tpu_custom_call.1} parent=1 // pred_fallthru
      _
    %v15 = vld [vmem:[%s0] sm:$0x3]
    %v16 = vld [vmem:[%s1] sm:$0xff]
    %v17 = vld [vmem:[%s1 + $0x8] sm:$0xff]
    %v18 = vld [vmem:[%s1 + $0x10] sm:$0xff]
    %v19 = vld [vmem:[%s1 + $0x18] sm:$0xff]
    %v20 = vld [vmem:[%s1 + $0x20] sm:$0xff]
    %v21 = vld [vmem:[%s1 + $0x28] sm:$0xff]
    %v22 = vld [vmem:[%s1 + $0x30] sm:$0xff]
    %v23 = vld [vmem:[%s1 + $0x38] sm:$0xff]
    %vm24 = vcmask 261120
    %v26 = vsel %vm24, %v15, 0
    %v29 = vsel %vm24, %v16, 0
    %v32 = vsel %vm24, %v17, 0
    %v35 = vsel %vm24, %v18, 0
    %v38 = vsel %vm24, %v19, 0
    %v41 = vsel %vm24, %v20, 0
    %v44 = vsel %vm24, %v21, 0
    %v47 = vsel %vm24, %v22, 0
    %v50 = vsel %vm24, %v23, 0
    %52 = vmatpush.xpose.msra.mxu0 0.0
    %53 = vmatpush.xpose.msra.mxu0 0.0
    %54 = vmatpush.xpose.msra.mxu0 0.0
    %55 = vmatpush.xpose.msra.mxu0 0.0
    %56 = vmatpush.xpose.msra.mxu0 0.0
    %57 = vmatpush.xpose.msra.mxu0 0.0
    %58 = vmatpush.xpose.msra.mxu0 0.0
    %59 = vmatpush.xpose.msra.mxu0 0.0
    %60 = vmatpush.xpose.msra.mxu0 %v50
    %61 = vmatpush.xpose.msra.mxu0 %v47
    %62 = vmatpush.xpose.msra.mxu0 %v44
    %63 = vmatpush.xpose.msra.mxu0 %v41
    %64 = vmatpush.xpose.msra.mxu0 %v38
    %65 = vmatpush.xpose.msra.mxu0 %v35
    %66 = vmatpush.xpose.msra.mxu0 %v32
    %67 = vmatpush.xpose.msra.mxu0 %v29
    %68 = vmatmul.f32.gmra.mxu0 %v26
    %v69 = vpop.f32.mrf.mxu0
    %v70 = vadd.f32 0.0, %v69
    %71 = vdwg.mxu0
    %v72 = vmul.f32 %v70, 0.25
    %v73 = vld [vmem:[%s2] sm:$0x1]
    %v75 = vperm.slane %v73, 0
    %v77 = vadd.f32 %v72, %v75
    %vm78 = vcmask 517120
    %79 = vst.msk [vmem:[#allocation2] sm:$0x3] %vm78, %v77
    // Predicated region
    $region14: #{tpu_custom_call.1} parent=1 // pred_check
      _
    $region15: #{tpu_custom_call.1} parent=1 // pred_check_branch
      %81 = sbr.rel (0) target = $region17
    $region16: #{tpu_custom_call.1} parent=1 // pred_region
      %83 = vsyncadd [#allocation3], 0
      %s85 = sshll.u32 [#allocation2], 4
      %s86 = int_to_ptr.vmem [resolvable:$true] %s85
      %s87 = sshll.u32 %s3, 4
      %s88 = int_to_ptr.hbm [resolvable:$true] %s87
      %90 = dma.vmem_to_hbm [thread:$0]  %s86, 32, %s88, [#allocation3]
    $region17: #{tpu_custom_call.1} parent=1 // pred_fallthru
      _
    // Predicated region
    $region18: #{tpu_custom_call.1} parent=1 // pred_check
      _
    $region19: #{tpu_custom_call.1} parent=1 // pred_check_branch
      %92 = sbr.rel (0) target = $region21
    $region20: #{tpu_custom_call.1} parent=1 // pred_region
      %94 = dma.done [#allocation3], 32
    $region21: #{tpu_custom_call.1} parent=1 // pred_fallthru
      _
    %95 = vsyncpa [#allocation3], 1

</llo_original>
